<compile_context>
chip_gen: v7x
topology: tpu7x:2x2x1
jax: 0.10.0
libtpu: 0.0.40
codegen_flags: <defaults>
</compile_context>

<pallas_src>
import functools

import jax
import jax.numpy as jnp
from jax import lax
from jax.experimental import pallas as pl
from jax.experimental.pallas import tpu as pltpu


def _snn_sgl_rollout_kernel(x_ref, w1_ref, w2_ref, b2_ref,
                            act_ref, w1_new_ref, *, lr, batch):
    t = pl.program_id(0)

    # Load the initial SGL weight into the VMEM-resident carried output once.
    @pl.when(t == 0)
    def _():
        w1_new_ref[...] = w1_ref[...]

    x = x_ref[0]                 # (B, Din) f32 — this step's observations
    w1 = w1_new_ref[...]         # (H, Din) f32 — current (pre-update) SGL weight
    w2 = w2_ref[...]             # (Dout, H) f32
    b2 = b2_ref[...]             # (1, Dout) f32

    # spike encoding of the input
    x_pre = (x > 0.0).astype(jnp.float32)                         # (B, Din)

    # pre-activation with current SGL weight; contract Din (no transpose)
    pre = lax.dot_general(
        x_pre, w1, (((1,), (1,)), ((), ())),
        preferred_element_type=jnp.float32)                       # (B, H)

    # post-synaptic spikes (threshold 0.5)
    x_post = (pre > 0.5).astype(jnp.float32)                      # (B, H)

    # SGLDense.forward output uses the PRE-update weight (== pre); LIF surrogate
    hidden = jax.nn.sigmoid(pre)                                  # (B, H)

    # fc_out + tanh output nonlinearity; contract H (no transpose)
    out = lax.dot_general(
        hidden, w2, (((1,), (1,)), ((), ())),
        preferred_element_type=jnp.float32) + b2                  # (B, Dout)
    act_ref[0] = jnp.tanh(out)

    # local SGL weight update:
    #   delta_w = lr * mean_b(x_post[:, :, None] * x_pre[:, None, :])
    #           = (lr / B) * contract_batch(x_post, x_pre)
    delta_w = (lr / batch) * lax.dot_general(
        x_post, x_pre, (((0,), (0,)), ((), ())),
        preferred_element_type=jnp.float32)                       # (H, Din)
    w1_new_ref[...] = w1 + delta_w


def snn_controller_sgl_rollout(x_seq, w1, w2, b2, *, lr=0.005):
    """Runs T sequential SNNControllerSGL forward passes (SGL weight carried).

    Args:
      x_seq: (T, B, Din) observations.
      w1:    (H, Din)    SGLDense weight (updated every step).
      w2:    (Dout, H)   fc_out weight.
      b2:    (1, Dout)   fc_out bias.
    Returns:
      actions: (T, B, Dout), w1_new: (H, Din) — the weight after T SGL updates.
    """
    T, B, Din = x_seq.shape
    H = w1.shape[0]
    Dout = w2.shape[0]

    kernel = functools.partial(_snn_sgl_rollout_kernel, lr=lr, batch=B)

    actions, w1_new = pl.pallas_call(
        kernel,
        out_shape=(
            jax.ShapeDtypeStruct((T, B, Dout), jnp.float32),
            jax.ShapeDtypeStruct((H, Din), jnp.float32),
        ),
        grid_spec=pltpu.PrefetchScalarGridSpec(
            num_scalar_prefetch=0,
            grid=(T,),
            in_specs=[
                pl.BlockSpec((1, B, Din), lambda t: (t, 0, 0)),   # x, per step
                pl.BlockSpec((H, Din), lambda t: (0, 0)),         # w1 (read at t==0)
                pl.BlockSpec((Dout, H), lambda t: (0, 0)),        # w2, VMEM-resident
                pl.BlockSpec((1, Dout), lambda t: (0, 0)),        # b2, VMEM-resident
            ],
            out_specs=(
                pl.BlockSpec((1, B, Dout), lambda t: (t, 0, 0)),  # action, per step
                pl.BlockSpec((H, Din), lambda t: (0, 0)),         # carried SGL weight
            ),
        ),
        # w1 (input 1) aliases w1_new (output 1): in-place recurrent weight update.
        input_output_aliases={1: 1},
        compiler_params=pltpu.CompilerParams(
            dimension_semantics=("arbitrary",),  # sequential weight carry over T
        ),
    )(x_seq, w1, w2, b2)
    return actions, w1_new


def snn_controller_sgl(x, w1, w2, b2, *, lr=0.005):
    """Single forward pass (T=1), matching the PyTorch module's forward()."""
    actions, w1_new = snn_controller_sgl_rollout(x[None], w1, w2, b2, lr=lr)
    return actions[0], w1_new


def init_params(key, input_dim=24, hidden_dim=32, output_dim=4):
    """Deterministic parameter init matching the PyTorch module's shapes."""
    k1, k2, k3 = jax.random.split(key, 3)
    # SGLDense.weight: randn(out, in) * 0.1
    w1 = 0.1 * jax.random.normal(k1, (hidden_dim, input_dim), dtype=jnp.float32)
    # nn.Linear(hidden, output): U(-1/sqrt(hidden), 1/sqrt(hidden))
    bound = 1.0 / jnp.sqrt(jnp.float32(hidden_dim))
    w2 = jax.random.uniform(
        k2, (output_dim, hidden_dim), dtype=jnp.float32, minval=-bound, maxval=bound
    )
    b2 = jax.random.uniform(
        k3, (1, output_dim), dtype=jnp.float32, minval=-bound, maxval=bound
    )
    return w1, w2, b2


if __name__ == "__main__":
    key = jax.random.PRNGKey(0)
    k_x, k_p = jax.random.split(key)

    T, batch, input_dim, hidden_dim, output_dim = 8, 8, 24, 32, 4
    x_seq = jax.random.normal(k_x, (T, batch, input_dim), dtype=jnp.float32)
    w1, w2, b2 = init_params(k_p, input_dim, hidden_dim, output_dim)

    lr = 0.005
    run = jax.jit(functools.partial(snn_controller_sgl_rollout, lr=lr))
    actions, w1_new = run(x_seq, w1, w2, b2)
    jax.block_until_ready((actions, w1_new))

    # pure-JAX reference: T sequential forward passes with in-place SGL update
    def ref_step(w, x):
        x_pre = (x > 0.0).astype(jnp.float32)
        pre = x_pre @ w.T
        x_post = (pre > 0.5).astype(jnp.float32)
        act = jnp.tanh(jax.nn.sigmoid(pre) @ w2.T + b2)
        w_next = w + (lr / batch) * (x_post.T @ x_pre)
        return w_next, act

    w_ref = w1
    ref_actions = []
    for t in range(T):
        w_ref, a = ref_step(w_ref, x_seq[t])
        ref_actions.append(a)
    ref_actions = jnp.stack(ref_actions)

    assert jnp.allclose(actions, ref_actions, atol=1e-5), "action mismatch"
    assert jnp.allclose(w1_new, w_ref, atol=1e-5), "SGL weight mismatch"

    # single-step wrapper sanity check (original module forward, T=1)
    a1, w1_1 = snn_controller_sgl(x_seq[0], w1, w2, b2, lr=lr)
    jax.block_until_ready((a1, w1_1))
    assert jnp.allclose(a1, ref_actions[0], atol=1e-5)

    print("KERNEL_OK")
</pallas_src>

<mosaic_0001>
module attributes {stable_mosaic.version = 11 : i64} {
  func.func @_snn_sgl_rollout_kernel(%arg0: i32, %arg1: memref<1x8x24xf32, #tpu.memory_space<vmem>>, %arg2: memref<32x24xf32, #tpu.memory_space<vmem>>, %arg3: memref<4x32xf32, #tpu.memory_space<vmem>>, %arg4: memref<1x4xf32, #tpu.memory_space<vmem>>, %arg5: memref<1x8x4xf32, #tpu.memory_space<vmem>>, %arg6: memref<32x24xf32, #tpu.memory_space<vmem>>) attributes {dimension_semantics = [#tpu.dimension_semantics<arbitrary>], iteration_bounds = array<i64: 8>, scalar_prefetch = 0 : i64, scratch_operands = 0 : i64, tpu.core_type = #tpu.core_type<tc>, window_params = [{transform_indices = @transform_0, window_bounds = array<i64: 1, 8, 24>}, {pipeline_mode = #tpu.pipeline_mode<synchronous>, transform_indices = @transform_1, window_bounds = array<i64: 32, 24>}, {pipeline_mode = #tpu.pipeline_mode<synchronous>, transform_indices = @transform_2, window_bounds = array<i64: 4, 32>}, {pipeline_mode = #tpu.pipeline_mode<synchronous>, transform_indices = @transform_3, window_bounds = array<i64: 1, 4>}, {transform_indices = @transform_4, window_bounds = array<i64: 1, 8, 4>}, {pipeline_mode = #tpu.pipeline_mode<synchronous>, transform_indices = @transform_5, window_bounds = array<i64: 32, 24>}]} {
    %c0_i32 = arith.constant 0 : i32
    %0 = arith.cmpi eq, %arg0, %c0_i32 : i32
    %1 = arith.extui %0 : i1 to i32
    %c0_i32_0 = arith.constant 0 : i32
    %2 = arith.cmpi ne, %1, %c0_i32_0 : i32
    scf.if %2 {
      %c0_20 = arith.constant 0 : index
      %c0_21 = arith.constant 0 : index
      %34 = vector.load %arg2[%c0_20, %c0_21] : memref<32x24xf32, #tpu.memory_space<vmem>>, vector<32x24xf32>
      %c0_22 = arith.constant 0 : index
      %c0_23 = arith.constant 0 : index
      %35 = vector.load %arg6[%c0_22, %c0_23] : memref<32x24xf32, #tpu.memory_space<vmem>>, vector<32x24xf32>
      tpu.vector_store %arg6[%c0_22, %c0_23], %34 {strides = array<i32>} : memref<32x24xf32, #tpu.memory_space<vmem>>, vector<32x24xf32>,
    } else {
    }
    %c0 = arith.constant 0 : index
    %c0_1 = arith.constant 0 : index
    %c0_2 = arith.constant 0 : index
    %3 = vector.load %arg1[%c0, %c0_1, %c0_2] : memref<1x8x24xf32, #tpu.memory_space<vmem>>, vector<1x8x24xf32>
    %4 = vector.shape_cast %3 : vector<1x8x24xf32> to vector<8x24xf32>
    %c0_3 = arith.constant 0 : index
    %c0_4 = arith.constant 0 : index
    %5 = vector.load %arg6[%c0_3, %c0_4] : memref<32x24xf32, #tpu.memory_space<vmem>>, vector<32x24xf32>
    %c0_5 = arith.constant 0 : index
    %c0_6 = arith.constant 0 : index
    %6 = vector.load %arg3[%c0_5, %c0_6] : memref<4x32xf32, #tpu.memory_space<vmem>>, vector<4x32xf32>
    %c0_7 = arith.constant 0 : index
    %c0_8 = arith.constant 0 : index
    %7 = vector.load %arg4[%c0_7, %c0_8] : memref<1x4xf32, #tpu.memory_space<vmem>>, vector<1x4xf32>
    %cst = arith.constant 0.000000e+00 : f32
    %8 = vector.broadcast %cst : f32 to vector<8x24xf32>
    %9 = arith.cmpf ogt, %4, %8 : vector<8x24xf32>
    %10 = arith.extui %9 : vector<8x24xi1> to vector<8x24xi32>
    %11 = arith.sitofp %10 : vector<8x24xi32> to vector<8x24xf32>
    %cst_9 = arith.constant dense<0.000000e+00> : vector<8x32xf32>
    %12 = tpu.matmul %11, %5, %cst_9 {dimension_numbers = #tpu.dot_dimension_numbers<[1], [1], [0], [0], [0, 0, 1, 0], [], []>} : vector<8x24xf32>, vector<32x24xf32>, vector<8x32xf32> -> vector<8x32xf32>
    %cst_10 = arith.constant 5.000000e-01 : f32
    %13 = vector.broadcast %cst_10 : f32 to vector<8x32xf32>
    %14 = arith.cmpf ogt, %12, %13 : vector<8x32xf32>
    %15 = arith.extui %14 : vector<8x32xi1> to vector<8x32xi32>
    %16 = arith.sitofp %15 : vector<8x32xi32> to vector<8x32xf32>
    %17 = arith.negf %12 : vector<8x32xf32>
    %18 = math.exp %17 : vector<8x32xf32>
    %cst_11 = arith.constant 1.000000e+00 : f32
    %19 = vector.broadcast %cst_11 : f32 to vector<8x32xf32>
    %20 = arith.addf %19, %18 : vector<8x32xf32>
    %21 = arith.divf %19, %20 : vector<8x32xf32>
    %cst_12 = arith.constant dense<0.000000e+00> : vector<8x4xf32>
    %22 = tpu.matmul %21, %6, %cst_12 {dimension_numbers = #tpu.dot_dimension_numbers<[1], [1], [0], [0], [0, 0, 1, 0], [], []>} : vector<8x32xf32>, vector<4x32xf32>, vector<8x4xf32> -> vector<8x4xf32>
    %23 = vector.broadcast %7 : vector<1x4xf32> to vector<8x4xf32>
    %24 = arith.addf %22, %23 : vector<8x4xf32>
    %25 = math.tanh %24 : vector<8x4xf32>
    %c0_13 = arith.constant 0 : index
    %c0_14 = arith.constant 0 : index
    %c0_15 = arith.constant 0 : index
    %26 = vector.load %arg5[%c0_13, %c0_14, %c0_15] : memref<1x8x4xf32, #tpu.memory_space<vmem>>, vector<1x8x4xf32>
    %27 = vector.shape_cast %26 : vector<1x8x4xf32> to vector<8x4xf32>
    %28 = vector.shape_cast %25 : vector<8x4xf32> to vector<1x8x4xf32>
    tpu.vector_store %arg5[%c0_13, %c0_14, %c0_15], %28 {strides = array<i32>} : memref<1x8x4xf32, #tpu.memory_space<vmem>>, vector<1x8x4xf32>,
    %cst_16 = arith.constant dense<0.000000e+00> : vector<32x24xf32>
    %29 = tpu.matmul %16, %11, %cst_16 {dimension_numbers = #tpu.dot_dimension_numbers<[0], [0], [1], [1], [0, 1, 1, 1], [], []>} : vector<8x32xf32>, vector<8x24xf32>, vector<32x24xf32> -> vector<32x24xf32>
    %cst_17 = arith.constant 6.250000e-04 : f32
    %30 = vector.broadcast %cst_17 : f32 to vector<32x24xf32>
    %31 = arith.mulf %30, %29 : vector<32x24xf32>
    %32 = arith.addf %5, %31 : vector<32x24xf32>
    %c0_18 = arith.constant 0 : index
    %c0_19 = arith.constant 0 : index
    %33 = vector.load %arg6[%c0_18, %c0_19] : memref<32x24xf32, #tpu.memory_space<vmem>>, vector<32x24xf32>
    tpu.vector_store %arg6[%c0_18, %c0_19], %32 {strides = array<i32>} : memref<32x24xf32, #tpu.memory_space<vmem>>, vector<32x24xf32>,
    return
  }
  func.func @transform_0(%arg0: i32) -> (i32, i32, i32) {
    %c0_i32 = arith.constant 0 : i32
    %c0_i32_0 = arith.constant 0 : i32
    %c0_i32_1 = arith.constant 0 : i32
    return %arg0, %c0_i32, %c0_i32_0 : i32, i32, i32
  }
  func.func @transform_1(%arg0: i32) -> (i32, i32) {
    %c0_i32 = arith.constant 0 : i32
    %c0_i32_0 = arith.constant 0 : i32
    %c0_i32_1 = arith.constant 0 : i32
    return %c0_i32, %c0_i32_0 : i32, i32
  }
  func.func @transform_2(%arg0: i32) -> (i32, i32) {
    %c0_i32 = arith.constant 0 : i32
    %c0_i32_0 = arith.constant 0 : i32
    %c0_i32_1 = arith.constant 0 : i32
    return %c0_i32, %c0_i32_0 : i32, i32
  }
  func.func @transform_3(%arg0: i32) -> (i32, i32) {
    %c0_i32 = arith.constant 0 : i32
    %c0_i32_0 = arith.constant 0 : i32
    %c0_i32_1 = arith.constant 0 : i32
    return %c0_i32, %c0_i32_0 : i32, i32
  }
  func.func @transform_4(%arg0: i32) -> (i32, i32, i32) {
    %c0_i32 = arith.constant 0 : i32
    %c0_i32_0 = arith.constant 0 : i32
    %c0_i32_1 = arith.constant 0 : i32
    return %arg0, %c0_i32, %c0_i32_0 : i32, i32, i32
  }
  func.func @transform_5(%arg0: i32) -> (i32, i32) {
    %c0_i32 = arith.constant 0 : i32
    %c0_i32_0 = arith.constant 0 : i32
    %c0_i32_1 = arith.constant 0 : i32
    return %c0_i32, %c0_i32_0 : i32, i32
  }
}

</mosaic_0001>

<llo_original>
// kernel: snn_controller_sgl_rollout.1
$region0: #{snn_controller_sgl_rollout.1}
  #allocation0 [shape = 'u32[]', space=smem, size = 0x4, offset = 0x4, fixed_abs, tag = 'smem constant byte address 0x4 - core index']
  #allocation1 [shape = 'u32[144,128]{1,0:T(1,128)}', space=vmem, size = 0x12000, scoped, tag = 'internal scratch']
  %s0 = inlined_call_operand.hbm [shape: f32[8,8,24], index: 0, kind: input, shape index: {}]
  %s1 = inlined_call_operand.vmem [shape: f32[32,24], index: 1, kind: input, shape index: {}, may-alias: {1,5}]
  %s2 = inlined_call_operand.vmem [shape: f32[4,32], index: 2, kind: input, shape index: {}]
  %s3 = inlined_call_operand.vmem [shape: f32[1,4], index: 3, kind: input, shape index: {}]
  %s4 = inlined_call_operand.vmem [shape: f32[8,8,4], index: 4, kind: output, shape index: {0}]
  %s5 = inlined_call_operand.vmem [shape: f32[32,24], index: 5, kind: output, shape index: {1}, may-alias: {1,5}]
  %6 = xla_tuple %s4, %s5
  %s7 = sld [smem:[#allocation0]]
  $region65: #{snn_controller_sgl_rollout.1} parent=0
    _
  %s9 = ssub.s32 1, %s7
  %s10 = scalar_select 0, %s9, %s7
  $region1: #{snn_controller_sgl_rollout.1} parent=0
    #allocation2 [shape = 'u8[8192]{0}', space=vmem, size = 0x2000, scoped, tag = 'input window, operand 0']
    #allocation3 [shape = 's32[2]{0}', space=sflag, size = 0x8, scoped, tag = 'scoped memory for snn_controller_sgl_rollout.1']
    %11 = vsyncpa [#allocation3], 0
    %s12 = scalar_lea.sflag [#allocation3], 1
    %13 = vsyncpa %s12, 0
    loop: start=0, step=1, limit=10
    $region2: #{snn_controller_sgl_rollout.1} parent=1 // loop_pre_header
      _
    $region3: #{snn_controller_sgl_rollout.1} parent=1 // loop_header
      %s15 = sphi 0, %s19
      %p16 = scmp.ge.s32.totalorder %s15, 10
      %s25 = sphi 0, %s27
      %s28 = sphi 0, %s25
      %s29 = sphi 0, %s28
      %s45 = sphi 0, %s29
      %s49 = sphi 0, %s49
      %s51 = sphi 0, %s49
      %s52 = sphi 0, %s51
      %s66 = sphi 0, %s52
      %s70 = sphi 0, %s70
      %s72 = sphi 0, %s70
      %s73 = sphi 0, %s72
      %s87 = sphi 0, %s73
      %s91 = sphi 0, %s91
      %s93 = sphi 0, %s91
      %s94 = sphi 0, %s93
      %s108 = sphi 0, %s94
      %s114 = sphi 0, %s116
      %s117 = sphi 0, %s114
      %s118 = sphi 0, %s117
      %s134 = sphi 0, %s118
      %s138 = sphi 0, %s138
      %s140 = sphi 0, %s138
      %s141 = sphi 0, %s140
      %s155 = sphi 0, %s141
    $region4: #{snn_controller_sgl_rollout.1} parent=1 // loop_header_branch
      %18 = sbr.rel (%p16) target = $region8
    $region5: #{snn_controller_sgl_rollout.1} parent=1 // loop_body
      %s20 = ssub.s32 %s15, 1
      %s21 = ssub.s32 %s15, 2
      %s22 = sadd.s32 %s15, 1
      %s23 = ssub.s32 %s15, %s22
      %p24 = scmp.eq.s32.totalorder %s23, 0
      %s26 = sadd.s32 %s25, 1
      %s27 = scalar_select %p24, %s25, %s26
      %p30 = pneg %p24
      %p31 = scmp.eq.s32.totalorder %s15, 7
      %p32 = por %p30, %p31
      %p33 = scmp.ne.s32.totalorder %s25, %s28
      %p34 = scmp.eq.s32.totalorder %s15, 0
      %p35 = por %p33, %p34
      %p36 = scmp.ne.s32.totalorder %s25, %s28
      %p37 = scmp.eq.s32.totalorder %s20, 7
      %p38 = por %p36, %p37
      %p39 = scmp.ne.s32.totalorder %s28, %s29
      %p40 = scmp.eq.s32.totalorder %s20, 0
      %p41 = por %p39, %p40
      %p42 = scmp.ne.s32.totalorder %s28, %s29
      %p43 = scmp.eq.s32.totalorder %s21, 7
      %p44 = por %p42, %p43
      %p46 = scmp.ne.s32.totalorder %s29, %s45
      %p47 = scmp.eq.s32.totalorder %s21, 0
      %p48 = por %p46, %p47
      %s50 = sadd.s32 %s49, 1
      %p53 = scmp.eq.s32.totalorder %s15, 7
      %p54 = scmp.ne.s32.totalorder %s49, %s51
      %p55 = scmp.eq.s32.totalorder %s15, 0
      %p56 = por %p54, %p55
      %p57 = scmp.ne.s32.totalorder %s49, %s51
      %p58 = scmp.eq.s32.totalorder %s20, 7
      %p59 = por %p57, %p58
      %p60 = scmp.ne.s32.totalorder %s51, %s52
      %p61 = scmp.eq.s32.totalorder %s20, 0
      %p62 = por %p60, %p61
      %p63 = scmp.ne.s32.totalorder %s51, %s52
      %p64 = scmp.eq.s32.totalorder %s21, 7
      %p65 = por %p63, %p64
      %p67 = scmp.ne.s32.totalorder %s52, %s66
      %p68 = scmp.eq.s32.totalorder %s21, 0
      %p69 = por %p67, %p68
      %s71 = sadd.s32 %s70, 1
      %p74 = scmp.eq.s32.totalorder %s15, 7
      %p75 = scmp.ne.s32.totalorder %s70, %s72
      %p76 = scmp.eq.s32.totalorder %s15, 0
      %p77 = por %p75, %p76
      %p78 = scmp.ne.s32.totalorder %s70, %s72
      %p79 = scmp.eq.s32.totalorder %s20, 7
      %p80 = por %p78, %p79
      %p81 = scmp.ne.s32.totalorder %s72, %s73
      %p82 = scmp.eq.s32.totalorder %s20, 0
      %p83 = por %p81, %p82
      %p84 = scmp.ne.s32.totalorder %s72, %s73
      %p85 = scmp.eq.s32.totalorder %s21, 7
      %p86 = por %p84, %p85
      %p88 = scmp.ne.s32.totalorder %s73, %s87
      %p89 = scmp.eq.s32.totalorder %s21, 0
      %p90 = por %p88, %p89
      %s92 = sadd.s32 %s91, 1
      %p95 = scmp.eq.s32.totalorder %s15, 7
      %p96 = scmp.ne.s32.totalorder %s91, %s93
      %p97 = scmp.eq.s32.totalorder %s15, 0
      %p98 = por %p96, %p97
      %p99 = scmp.ne.s32.totalorder %s91, %s93
      %p100 = scmp.eq.s32.totalorder %s20, 7
      %p101 = por %p99, %p100
      %p102 = scmp.ne.s32.totalorder %s93, %s94
      %p103 = scmp.eq.s32.totalorder %s20, 0
      %p104 = por %p102, %p103
      %p105 = scmp.ne.s32.totalorder %s93, %s94
      %p106 = scmp.eq.s32.totalorder %s21, 7
      %p107 = por %p105, %p106
      %p109 = scmp.ne.s32.totalorder %s94, %s108
      %p110 = scmp.eq.s32.totalorder %s21, 0
      %p111 = por %p109, %p110
      %s112 = ssub.s32 %s15, %s22
      %p113 = scmp.eq.s32.totalorder %s112, 0
      %s115 = sadd.s32 %s114, 1
      %s116 = scalar_select %p113, %s114, %s115
      %p119 = pneg %p113
      %p120 = scmp.eq.s32.totalorder %s15, 7
      %p121 = por %p119, %p120
      %p122 = scmp.ne.s32.totalorder %s114, %s117
      %p123 = scmp.eq.s32.totalorder %s15, 0
      %p124 = por %p122, %p123
      %p125 = scmp.ne.s32.totalorder %s114, %s117
      %p126 = scmp.eq.s32.totalorder %s20, 7
      %p127 = por %p125, %p126
      %p128 = scmp.ne.s32.totalorder %s117, %s118
      %p129 = scmp.eq.s32.totalorder %s20, 0
      %p130 = por %p128, %p129
      %p131 = scmp.ne.s32.totalorder %s117, %s118
      %p132 = scmp.eq.s32.totalorder %s21, 7
      %p133 = por %p131, %p132
      %p135 = scmp.ne.s32.totalorder %s118, %s134
      %p136 = scmp.eq.s32.totalorder %s21, 0
      %p137 = por %p135, %p136
      %s139 = sadd.s32 %s138, 1
      %p142 = scmp.eq.s32.totalorder %s15, 7
      %p143 = scmp.ne.s32.totalorder %s138, %s140
      %p144 = scmp.eq.s32.totalorder %s15, 0
      %p145 = por %p143, %p144
      %p146 = scmp.ne.s32.totalorder %s138, %s140
      %p147 = scmp.eq.s32.totalorder %s20, 7
      %p148 = por %p146, %p147
      %p149 = scmp.ne.s32.totalorder %s140, %s141
      %p150 = scmp.eq.s32.totalorder %s20, 0
      %p151 = por %p149, %p150
      %p152 = scmp.ne.s32.totalorder %s140, %s141
      %p153 = scmp.eq.s32.totalorder %s21, 7
      %p154 = por %p152, %p153
      %p156 = scmp.ne.s32.totalorder %s141, %s155
      %p157 = scmp.eq.s32.totalorder %s21, 0
      %p158 = por %p156, %p157
      %p159 = scmp.le.s32.totalorder 1, %s15
      %p160 = scmp.lt.s32.totalorder %s15, 9
      %p161 = pnand %p159, %p160
      %p162 = pneg %p161
      // Predicated region
      $region9: #{snn_controller_sgl_rollout.1} parent=5 // pred_check
        _
      $region10: #{snn_controller_sgl_rollout.1} parent=5 // pred_check_branch
        %164 = sbr.rel (%p161) target = $region12
      $region11: #{snn_controller_sgl_rollout.1} parent=5 // pred_region
        %s165 = ssub.s32 %s15, 1
        // Predicated region
        $region13: #{snn_controller_sgl_rollout.1} parent=11 // pred_check
          %p166 = pneg %p62
        $region14: #{snn_controller_sgl_rollout.1} parent=11 // pred_check_branch
          %168 = sbr.rel (%p166) target = $region16
        $region15: #{snn_controller_sgl_rollout.1} parent=11 // pred_region
          _
        $region16: #{snn_controller_sgl_rollout.1} parent=11 // pred_fallthru
          _
        // Predicated region
        $region17: #{snn_controller_sgl_rollout.1} parent=11 // pred_check
          %p169 = pneg %p83
        $region18: #{snn_controller_sgl_rollout.1} parent=11 // pred_check_branch
          %171 = sbr.rel (%p169) target = $region20
        $region19: #{snn_controller_sgl_rollout.1} parent=11 // pred_region
          _
        $region20: #{snn_controller_sgl_rollout.1} parent=11 // pred_fallthru
          _
        // Predicated region
        $region21: #{snn_controller_sgl_rollout.1} parent=11 // pred_check
          %p172 = pneg %p104
        $region22: #{snn_controller_sgl_rollout.1} parent=11 // pred_check_branch
          %174 = sbr.rel (%p172) target = $region24
        $region23: #{snn_controller_sgl_rollout.1} parent=11 // pred_region
          _
        $region24: #{snn_controller_sgl_rollout.1} parent=11 // pred_fallthru
          _
      $region12: #{snn_controller_sgl_rollout.1} parent=5 // pred_fallthru
        _
      %p175 = scmp.lt.s32.totalorder %s15, 8
      // Predicated region
      $region25: #{snn_controller_sgl_rollout.1} parent=5 // pred_check
        %p176 = pneg %p175
      $region26: #{snn_controller_sgl_rollout.1} parent=5 // pred_check_branch
        %178 = sbr.rel (%p176) target = $region28
      $region27: #{snn_controller_sgl_rollout.1} parent=5 // pred_region
        // Predicated region
        $region29: #{snn_controller_sgl_rollout.1} parent=27 // pred_check
          %p179 = pneg %p35
        $region30: #{snn_controller_sgl_rollout.1} parent=27 // pred_check_branch
          %181 = sbr.rel (%p179) target = $region32
        $region31: #{snn_controller_sgl_rollout.1} parent=27 // pred_region
          %s182 = sand.u32 %s25, 1
          %s183 = scalar_lea.sflag [#allocation3], %s182
          %s184 = sand.u32 %s25, 1
          %s185 = smul.addr %s184, 8
          %s186 = scalar_lea.vmem [#allocation2], %s185
          %s188 = ssub.s32 128, 128
          %189 = vsyncadd %s183, %s188
          %s190 = smul.addr %s15, 128
          %s191 = scalar_lea.hbm %s0, %s190
          %s193 = sshll.u32 %s186, 4
          %s194 = int_to_ptr.vmem [resolvable:$true] %s193
          %196 = dma.hbm_to_vmem [thread:$0]  %s191, 128, %s194, %s183
        $region32: #{snn_controller_sgl_rollout.1} parent=27 // pred_fallthru
          _
      $region28: #{snn_controller_sgl_rollout.1} parent=5 // pred_fallthru
        _
      %p197 = scmp.le.s32.totalorder 1, %s15
      %p198 = scmp.lt.s32.totalorder %s15, 9
      %p199 = pnand %p197, %p198
      %p200 = pneg %p199
      // Predicated region
      $region33: #{snn_controller_sgl_rollout.1} parent=5 // pred_check
        _
      $region34: #{snn_controller_sgl_rollout.1} parent=5 // pred_check_branch
        %202 = sbr.rel (%p199) target = $region36
      $region35: #{snn_controller_sgl_rollout.1} parent=5 // pred_region
        %s203 = ssub.s32 %s15, 1
        %s204 = sand.u32 %s28, 1
        %s205 = scalar_lea.sflag [#allocation3], %s204
        %s206 = sand.u32 %s28, 1
        %s207 = smul.addr %s206, 8
        %s208 = scalar_lea.vmem [#allocation2], %s207
        // Predicated region
        $region37: #{snn_controller_sgl_rollout.1} parent=35 // pred_check
          %p209 = pneg %p41
        $region38: #{snn_controller_sgl_rollout.1} parent=35 // pred_check_branch
          %211 = sbr.rel (%p209) target = $region40
        $region39: #{snn_controller_sgl_rollout.1} parent=35 // pred_region
          %212 = dma.done %s205, 128
        $region40: #{snn_controller_sgl_rollout.1} parent=35 // pred_fallthru
          _
        %s213 = sand.u32 %s28, 1
        %s214 = scalar_lea.sflag [#allocation3], %s213
        %s215 = sand.u32 %s28, 1
        %s216 = smul.addr %s215, 8
        %s217 = scalar_lea.vmem [#allocation2], %s216
        %p218 = pneg %p41
        %p219 = pneg %p38
        %p220 = pneg %p62
        %p221 = pneg %p59
        %p222 = pneg %p83
        %p223 = pneg %p80
        %p224 = pneg %p104
        %p225 = pneg %p101
        %p226 = pneg %p130
        %p227 = pneg %p127
        %p228 = scmp.lt.s32.totalorder %s20, 7
        %s229 = scalar_select %p228, %s20, 7
        %s230 = smul.addr %s229, 8
        %s231 = scalar_lea.vmem %s4, %s230
        %p232 = pneg %p151
        %p233 = pneg %p148
        %p234 = scmp.lt.s32.totalorder %s20, 7
        %s235 = scalar_select %p234, %s20, 7
        %s236 = smul.addr %s235, 8
        %s237 = scalar_lea.vmem %s4, %s236
        %p238 = scmp.eq.s32.totalorder %s20, 0
        // Predicated region
        $region41: #{snn_controller_sgl_rollout.1} parent=35 // pred_check
          %p239 = pneg %p238
        $region42: #{snn_controller_sgl_rollout.1} parent=35 // pred_check_branch
          %241 = sbr.rel (%p239) target = $region44
        $region43: #{snn_controller_sgl_rollout.1} parent=35 // pred_region
          %v242 = vld [vmem:[%s1] sm:$0xff]
          %v243 = vld [vmem:[%s1 + $0x8] sm:$0xff]
          %v244 = vld [vmem:[%s1 + $0x10] sm:$0xff]
          %v245 = vld [vmem:[%s1 + $0x18] sm:$0xff]
          %vm246 = vcmask 195584
          %247 = vst.msk [vmem:[%s5] sm:$0xff] %vm246, %v242
          %248 = vst.msk [vmem:[%s5 + $0x8] sm:$0xff] %vm246, %v243
          %249 = vst.msk [vmem:[%s5 + $0x10] sm:$0xff] %vm246, %v244
          %250 = vst.msk [vmem:[%s5 + $0x18] sm:$0xff] %vm246, %v245
        $region44: #{snn_controller_sgl_rollout.1} parent=35 // pred_fallthru
          _
        %v251 = vld [vmem:[%s208] sm:$0xff]
        %v252 = vld [vmem:[%s5] sm:$0xff]
        %v253 = vld [vmem:[%s5 + $0x8] sm:$0xff]
        %v254 = vld [vmem:[%s5 + $0x10] sm:$0xff]
        %v255 = vld [vmem:[%s5 + $0x18] sm:$0xff]
        %v256 = vld [vmem:[%s2] sm:$0xf]
        %v257 = vld [vmem:[%s3] sm:$0x1]
        %vm258 = vcmp.gt.f32.partialorder %v251, 0.0
        %v259 = vsel %vm258, 1, 0
        %v260 = vcvt.s32.f32 %v259
        %vm261 = vcmask 195584
        %v263 = vsel %vm261, %v260, 0
        %v266 = vsel %vm261, %v252, 0
        %v269 = vsel %vm261, %v253, 0
        %v272 = vsel %vm261, %v254, 0
        %v275 = vsel %vm261, %v255, 0
        %277 = vmatprep.subr.mxu0 0.0
        %278 = vmatpush1.xpose.msra.mxu0 %v266
        %279 = vmatprep.subr.mxu0 0.0
        %280 = vmatpush1.xpose.msra.mxu0 %v269
        %281 = vmatprep.subr.mxu0 0.0
        %282 = vmatpush1.xpose.msra.mxu0 %v272
        %283 = vmatprep.subr.mxu0 0.0
        %284 = vmatpush1.xpose.msra.mxu0 %v275
        %285 = vmatprep.subr.mxu0 0.0
        %286 = vmatpush1.xpose.msra.mxu0 0.0
        %287 = vmatprep.subr.mxu0 0.0
        %288 = vmatpush1.xpose.msra.mxu0 0.0
        %289 = vmatprep.subr.mxu0 0.0
        %290 = vmatpush1.xpose.msra.mxu0 0.0
        %291 = vmatprep.subr.mxu0 0.0
        %292 = vmatpush1.xpose.msra.mxu0 0.0
        %293 = vmatprep.subr.mxu0 0.0
        %294 = vmatpush1.xpose.msra.mxu0 0.0
        %295 = vmatprep.subr.mxu0 0.0
        %296 = vmatpush1.xpose.msra.mxu0 0.0
        %297 = vmatprep.subr.mxu0 0.0
        %298 = vmatpush1.xpose.msra.mxu0 0.0
        %299 = vmatprep.subr.mxu0 0.0
        %300 = vmatpush1.xpose.msra.mxu0 0.0
        %301 = vmatprep.subr.mxu0 0.0
        %302 = vmatpush1.xpose.msra.mxu0 0.0
        %303 = vmatprep.subr.mxu0 0.0
        %304 = vmatpush1.xpose.msra.mxu0 0.0
        %305 = vmatprep.subr.mxu0 0.0
        %306 = vmatpush1.xpose.msra.mxu0 0.0
        %307 = vmatprep.subr.mxu0 0.0
        %308 = vmatpush1.xpose.msra.mxu0 0.0
        %309 = vmatprep.subr.mxu0 0.0
        %310 = vmatpush1.xpose.msra.mxu0 0.0
        %311 = vmatprep.subr.mxu0 0.0
        %312 = vmatpush1.xpose.msra.mxu0 0.0
        %313 = vmatprep.subr.mxu0 0.0
        %314 = vmatpush1.xpose.msra.mxu0 0.0
        %315 = vmatprep.subr.mxu0 0.0
        %316 = vmatpush1.xpose.msra.mxu0 0.0
        %317 = vmatprep.subr.mxu0 0.0
        %318 = vmatpush1.xpose.msra.mxu0 0.0
        %319 = vmatprep.subr.mxu0 0.0
        %320 = vmatpush1.xpose.msra.mxu0 0.0
        %321 = vmatprep.subr.mxu0 0.0
        %322 = vmatpush1.xpose.msra.mxu0 0.0
        %323 = vmatprep.subr.mxu0 0.0
        %324 = vmatpush1.xpose.msra.mxu0 0.0
        %325 = vmatprep.subr.mxu0 0.0
        %326 = vmatpush1.xpose.msra.mxu0 0.0
        %327 = vmatprep.subr.mxu0 0.0
        %328 = vmatpush1.xpose.msra.mxu0 0.0
        %329 = vmatprep.subr.mxu0 0.0
        %330 = vmatpush1.xpose.msra.mxu0 0.0
        %331 = vmatprep.subr.mxu0 0.0
        %332 = vmatpush1.xpose.msra.mxu0 0.0
        %333 = vmatprep.subr.mxu0 0.0
        %334 = vmatpush1.xpose.msra.mxu0 0.0
        %335 = vmatprep.subr.mxu0 0.0
        %336 = vmatpush1.xpose.msra.mxu0 0.0
        %337 = vmatprep.subr.mxu0 0.0
        %338 = vmatpush1.xpose.msra.mxu0 0.0
        %339 = vmatprep.subr.mxu0 0.0
        %340 = vmatpush1.xpose.msra.mxu0 0.0
        %341 = vmatprep.mubr.f32.mxu0 0.0
        %342 = vmatmul.mubr.f32.gmra.mrb[0].mxu0 %v263
        %v343 = vpop.f32.mrb[0].mxu0
        %v344 = vadd.f32 0.0, %v343
        %v345 = vpop.f32.mrb[0].mxu0
        %346 = vdwg.mxu0
        %vm347 = vcmp.gt.f32.partialorder %v344, 0.5
        %v348 = vsel %vm347, 1, 0
        %v349 = vcvt.s32.f32 %v348
        %v350 = vxor.u32 %v344, 2147483648
        %v351 = vmul.f32 %v350, 1.442695
        %v352 = vpow.pop %v351
        %v353 = vadd.f32 %v352, 1.0
        %v354 = vrcp.pop %v353
        %v355 = vmul.f32 1.0, %v354
        %v357 = vlaneseq
        %v358 = vshrl.u32 %v357, 7
        %v359 = vsub.s32 0, %v358
        %v360 = vrot.slane %v257, %v359
        %vm362 = vcmask 261120
        %v364 = vsel %vm362, %v355, 0
        %v367 = vsel %vm362, %v256, 0
        %369 = vmatprep.subr.mxu0 0.0
        %370 = vmatpush1.xpose.msra.mxu0 %v367
        %371 = vmatprep.subr.mxu0 0.0
        %372 = vmatpush1.xpose.msra.mxu0 0.0
        %373 = vmatprep.subr.mxu0 0.0
        %374 = vmatpush1.xpose.msra.mxu0 0.0
        %375 = vmatprep.subr.mxu0 0.0
        %376 = vmatpush1.xpose.msra.mxu0 0.0
        %377 = vmatprep.subr.mxu0 0.0
        %378 = vmatpush1.xpose.msra.mxu0 0.0
        %379 = vmatprep.subr.mxu0 0.0
        %380 = vmatpush1.xpose.msra.mxu0 0.0
        %381 = vmatprep.subr.mxu0 0.0
        %382 = vmatpush1.xpose.msra.mxu0 0.0
        %383 = vmatprep.subr.mxu0 0.0
        %384 = vmatpush1.xpose.msra.mxu0 0.0
        %385 = vmatprep.subr.mxu0 0.0
        %386 = vmatpush1.xpose.msra.mxu0 0.0
        %387 = vmatprep.subr.mxu0 0.0
        %388 = vmatpush1.xpose.msra.mxu0 0.0
        %389 = vmatprep.subr.mxu0 0.0
        %390 = vmatpush1.xpose.msra.mxu0 0.0
        %391 = vmatprep.subr.mxu0 0.0
        %392 = vmatpush1.xpose.msra.mxu0 0.0
        %393 = vmatprep.subr.mxu0 0.0
        %394 = vmatpush1.xpose.msra.mxu0 0.0
        %395 = vmatprep.subr.mxu0 0.0
        %396 = vmatpush1.xpose.msra.mxu0 0.0
        %397 = vmatprep.subr.mxu0 0.0
        %398 = vmatpush1.xpose.msra.mxu0 0.0
        %399 = vmatprep.subr.mxu0 0.0
        %400 = vmatpush1.xpose.msra.mxu0 0.0
        %401 = vmatprep.subr.mxu0 0.0
        %402 = vmatpush1.xpose.msra.mxu0 0.0
        %403 = vmatprep.subr.mxu0 0.0
        %404 = vmatpush1.xpose.msra.mxu0 0.0
        %405 = vmatprep.subr.mxu0 0.0
        %406 = vmatpush1.xpose.msra.mxu0 0.0
        %407 = vmatprep.subr.mxu0 0.0
        %408 = vmatpush1.xpose.msra.mxu0 0.0
        %409 = vmatprep.subr.mxu0 0.0
        %410 = vmatpush1.xpose.msra.mxu0 0.0
        %411 = vmatprep.subr.mxu0 0.0
        %412 = vmatpush1.xpose.msra.mxu0 0.0
        %413 = vmatprep.subr.mxu0 0.0
        %414 = vmatpush1.xpose.msra.mxu0 0.0
        %415 = vmatprep.subr.mxu0 0.0
        %416 = vmatpush1.xpose.msra.mxu0 0.0
        %417 = vmatprep.subr.mxu0 0.0
        %418 = vmatpush1.xpose.msra.mxu0 0.0
        %419 = vmatprep.subr.mxu0 0.0
        %420 = vmatpush1.xpose.msra.mxu0 0.0
        %421 = vmatprep.subr.mxu0 0.0
        %422 = vmatpush1.xpose.msra.mxu0 0.0
        %423 = vmatprep.subr.mxu0 0.0
        %424 = vmatpush1.xpose.msra.mxu0 0.0
        %425 = vmatprep.subr.mxu0 0.0
        %426 = vmatpush1.xpose.msra.mxu0 0.0
        %427 = vmatprep.subr.mxu0 0.0
        %428 = vmatpush1.xpose.msra.mxu0 0.0
        %429 = vmatprep.subr.mxu0 0.0
        %430 = vmatpush1.xpose.msra.mxu0 0.0
        %431 = vmatprep.subr.mxu0 0.0
        %432 = vmatpush1.xpose.msra.mxu0 0.0
        %433 = vmatprep.mubr.f32.mxu0 0.0
        %434 = vmatmul.mubr.f32.gmra.mrb[0].mxu0 %v364
        %v435 = vpop.f32.mrb[0].mxu0
        %v436 = vadd.f32 %v360, %v435
        %v437 = vpop.f32.mrb[0].mxu0
        %438 = vdwg.mxu0
        %v439 = vtanh.pop %v436
        %vm440 = vcmask 31744
        %441 = vst.msk [vmem:[%s237] sm:$0xff] %vm440, %v439
        %442 = vxpose.xlu0.b32.start [1/16] %v349, 128
        %443 = vxpose.xlu0.b32.cont [2/16] 0.0, 128
        %444 = vxpose.xlu0.b32.cont [3/16] 0.0, 128
        %445 = vxpose.xlu0.b32.cont [4/16] 0.0, 128
        %446 = vxpose.xlu0.b32.cont [5/16] 0.0, 128
        %447 = vxpose.xlu0.b32.cont [6/16] 0.0, 128
        %448 = vxpose.xlu0.b32.cont [7/16] 0.0, 128
        %449 = vxpose.xlu0.b32.cont [8/16] 0.0, 128
        %450 = vxpose.xlu0.b32.cont [9/16] 0.0, 128
        %451 = vxpose.xlu0.b32.cont [10/16] 0.0, 128
        %452 = vxpose.xlu0.b32.cont [11/16] 0.0, 128
        %453 = vxpose.xlu0.b32.cont [12/16] 0.0, 128
        %454 = vxpose.xlu0.b32.cont [13/16] 0.0, 128
        %455 = vxpose.xlu0.b32.cont [14/16] 0.0, 128
        %456 = vxpose.xlu0.b32.cont [15/16] 0.0, 128
        %457 = vxpose.xlu0.b32.end [16/16] 0.0, 128
        %v458 = vpop.trf.xlu0
        %v459 = vpop.trf.xlu0
        %v460 = vpop.trf.xlu0
        %v461 = vpop.trf.xlu0
        %v462 = vpop.trf.xlu0
        %v463 = vpop.trf.xlu0
        %v464 = vpop.trf.xlu0
        %v465 = vpop.trf.xlu0
        %v466 = vpop.trf.xlu0
        %v467 = vpop.trf.xlu0
        %v468 = vpop.trf.xlu0
        %v469 = vpop.trf.xlu0
        %v470 = vpop.trf.xlu0
        %v471 = vpop.trf.xlu0
        %v472 = vpop.trf.xlu0
        %v473 = vpop.trf.xlu0
        %vm474 = vcmask 64512
        %v476 = vsel %vm474, %v458, 0
        %v479 = vsel %vm474, %v459, 0
        %v482 = vsel %vm474, %v460, 0
        %v485 = vsel %vm474, %v461, 0
        %487 = vmatprep.subr.mxu0 0.0
        %488 = vmatpush1.msra.mxu0 %v260
        %489 = vmatprep.subr.mxu0 0.0
        %490 = vmatpush1.msra.mxu0 0.0
        %491 = vmatprep.subr.mxu0 0.0
        %492 = vmatpush1.msra.mxu0 0.0
        %493 = vmatprep.subr.mxu0 0.0
        %494 = vmatpush1.msra.mxu0 0.0
        %495 = vmatprep.subr.mxu0 0.0
        %496 = vmatpush1.msra.mxu0 0.0
        %497 = vmatprep.subr.mxu0 0.0
        %498 = vmatpush1.msra.mxu0 0.0
        %499 = vmatprep.subr.mxu0 0.0
        %500 = vmatpush1.msra.mxu0 0.0
        %501 = vmatprep.subr.mxu0 0.0
        %502 = vmatpush1.msra.mxu0 0.0
        %503 = vmatprep.subr.mxu0 0.0
        %504 = vmatpush1.msra.mxu0 0.0
        %505 = vmatprep.subr.mxu0 0.0
        %506 = vmatpush1.msra.mxu0 0.0
        %507 = vmatprep.subr.mxu0 0.0
        %508 = vmatpush1.msra.mxu0 0.0
        %509 = vmatprep.subr.mxu0 0.0
        %510 = vmatpush1.msra.mxu0 0.0
        %511 = vmatprep.subr.mxu0 0.0
        %512 = vmatpush1.msra.mxu0 0.0
        %513 = vmatprep.subr.mxu0 0.0
        %514 = vmatpush1.msra.mxu0 0.0
        %515 = vmatprep.subr.mxu0 0.0
        %516 = vmatpush1.msra.mxu0 0.0
        %517 = vmatprep.subr.mxu0 0.0
        %518 = vmatpush1.msra.mxu0 0.0
        %519 = vmatprep.subr.mxu0 0.0
        %520 = vmatpush1.msra.mxu0 0.0
        %521 = vmatprep.subr.mxu0 0.0
        %522 = vmatpush1.msra.mxu0 0.0
        %523 = vmatprep.subr.mxu0 0.0
        %524 = vmatpush1.msra.mxu0 0.0
        %525 = vmatprep.subr.mxu0 0.0
        %526 = vmatpush1.msra.mxu0 0.0
        %527 = vmatprep.subr.mxu0 0.0
        %528 = vmatpush1.msra.mxu0 0.0
        %529 = vmatprep.subr.mxu0 0.0
        %530 = vmatpush1.msra.mxu0 0.0
        %531 = vmatprep.subr.mxu0 0.0
        %532 = vmatpush1.msra.mxu0 0.0
        %533 = vmatprep.subr.mxu0 0.0
        %534 = vmatpush1.msra.mxu0 0.0
        %535 = vmatprep.subr.mxu0 0.0
        %536 = vmatpush1.msra.mxu0 0.0
        %537 = vmatprep.subr.mxu0 0.0
        %538 = vmatpush1.msra.mxu0 0.0
        %539 = vmatprep.subr.mxu0 0.0
        %540 = vmatpush1.msra.mxu0 0.0
        %541 = vmatprep.subr.mxu0 0.0
        %542 = vmatpush1.msra.mxu0 0.0
        %543 = vmatprep.subr.mxu0 0.0
        %544 = vmatpush1.msra.mxu0 0.0
        %545 = vmatprep.subr.mxu0 0.0
        %546 = vmatpush1.msra.mxu0 0.0
        %547 = vmatprep.subr.mxu0 0.0
        %548 = vmatpush1.msra.mxu0 0.0
        %549 = vmatprep.subr.mxu0 0.0
        %550 = vmatpush1.msra.mxu0 0.0
        %551 = vmatprep.mubr.f32.mxu0 0.0
        %552 = vmatmul.mubr.f32.gmra.mrb[0].mxu0 %v476
        %v553 = vpop.f32.mrb[0].mxu0
        %v554 = vadd.f32 0.0, %v553
        %v555 = vpop.f32.mrb[0].mxu0
        %556 = vmatprep.mubr.f32.mxu0 0.0
        %557 = vmatmul.mubr.f32.gmra.mrb[0].mxu0 %v479
        %v558 = vpop.f32.mrb[0].mxu0
        %v559 = vadd.f32 0.0, %v558
        %v560 = vpop.f32.mrb[0].mxu0
        %561 = vmatprep.mubr.f32.mxu0 0.0
        %562 = vmatmul.mubr.f32.gmra.mrb[0].mxu0 %v482
        %v563 = vpop.f32.mrb[0].mxu0
        %v564 = vadd.f32 0.0, %v563
        %v565 = vpop.f32.mrb[0].mxu0
        %566 = vmatprep.mubr.f32.mxu0 0.0
        %567 = vmatmul.mubr.f32.gmra.mrb[0].mxu0 %v485
        %v568 = vpop.f32.mrb[0].mxu0
        %v569 = vadd.f32 0.0, %v568
        %v570 = vpop.f32.mrb[0].mxu0
        %571 = vdwg.mxu0
        %v572 = vmul.f32 %v554, 0.000625
        %v573 = vmul.f32 %v559, 0.000625
        %v574 = vmul.f32 %v564, 0.000625
        %v575 = vmul.f32 %v569, 0.000625
        %v576 = vadd.f32 %v252, %v572
        %v577 = vadd.f32 %v253, %v573
        %v578 = vadd.f32 %v254, %v574
        %v579 = vadd.f32 %v255, %v575
        %580 = vst.msk [vmem:[%s5] sm:$0xff] %vm261, %v576
        %581 = vst.msk [vmem:[%s5 + $0x8] sm:$0xff] %vm261, %v577
        %582 = vst.msk [vmem:[%s5 + $0x10] sm:$0xff] %vm261, %v578
        %583 = vst.msk [vmem:[%s5 + $0x18] sm:$0xff] %vm261, %v579
        %p584 = scmp.lt.s32.totalorder %s20, 7
        %s585 = scalar_select %p584, %s20, 7
        %s586 = smul.addr %s585, 8
        %s587 = scalar_lea.vmem %s4, %s586
        // Predicated region
        $region45: #{snn_controller_sgl_rollout.1} parent=35 // pred_check
          %p588 = pneg %p127
        $region46: #{snn_controller_sgl_rollout.1} parent=35 // pred_check_branch
          %590 = sbr.rel (%p588) target = $region48
        $region47: #{snn_controller_sgl_rollout.1} parent=35 // pred_region
          _
        $region48: #{snn_controller_sgl_rollout.1} parent=35 // pred_fallthru
          _
        // Predicated region
        $region49: #{snn_controller_sgl_rollout.1} parent=35 // pred_check
          %p591 = pneg %p148
        $region50: #{snn_controller_sgl_rollout.1} parent=35 // pred_check_branch
          %593 = sbr.rel (%p591) target = $region52
        $region51: #{snn_controller_sgl_rollout.1} parent=35 // pred_region
          _
        $region52: #{snn_controller_sgl_rollout.1} parent=35 // pred_fallthru
          _
        // Predicated region
        $region53: #{snn_controller_sgl_rollout.1} parent=35 // pred_check
          %p594 = pneg %p148
        $region54: #{snn_controller_sgl_rollout.1} parent=35 // pred_check_branch
          %596 = sbr.rel (%p594) target = $region56
        $region55: #{snn_controller_sgl_rollout.1} parent=35 // pred_region
          _
        $region56: #{snn_controller_sgl_rollout.1} parent=35 // pred_fallthru
          _
      $region36: #{snn_controller_sgl_rollout.1} parent=5 // pred_fallthru
        _
      %p597 = scmp.le.s32.totalorder 2, %s15
      // Predicated region
      $region57: #{snn_controller_sgl_rollout.1} parent=5 // pred_check
        %p598 = pneg %p597
      $region58: #{snn_controller_sgl_rollout.1} parent=5 // pred_check_branch
        %600 = sbr.rel (%p598) target = $region60
      $region59: #{snn_controller_sgl_rollout.1} parent=5 // pred_region
        %s601 = ssub.s32 %s15, 2
        // Predicated region
        $region61: #{snn_controller_sgl_rollout.1} parent=59 // pred_check
          %p602 = pneg %p133
        $region62: #{snn_controller_sgl_rollout.1} parent=59 // pred_check_branch
          %604 = sbr.rel (%p602) target = $region64
        $region63: #{snn_controller_sgl_rollout.1} parent=59 // pred_region
          %p605 = scmp.lt.s32.totalorder %s21, 7
          %s606 = scalar_select %p605, %s21, 7
          %s607 = smul.addr %s606, 8
          %s608 = scalar_lea.vmem %s4, %s607
        $region64: #{snn_controller_sgl_rollout.1} parent=59 // pred_fallthru
          _
      $region60: #{snn_controller_sgl_rollout.1} parent=5 // pred_fallthru
        _
    $region6: #{snn_controller_sgl_rollout.1} parent=1 // loop_footer
      %s19 = sadd.s32 1, %s15
    $region7: #{snn_controller_sgl_rollout.1} parent=1 // loop_footer_branch
      %14 = sbr.rel target = $region3
    $region8: #{snn_controller_sgl_rollout.1} parent=1 // loop_exit
      _
    %609 = vsyncpa [#allocation3], 1
    %s610 = scalar_lea.sflag [#allocation3], 1
    %611 = vsyncpa %s610, 1

</llo_original>
